<compile_context>
chip_gen: v7x
topology: tpu7x:2x2x1
jax: 0.10.0
libtpu: 0.0.40
codegen_flags: <defaults>
</compile_context>

<pallas_src>
import jax
import jax.numpy as jnp
from jax.experimental import pallas as pl
from jax.experimental.pallas import tpu as pltpu


# ---------------------------------------------------------------------------
# Kernel: one fused matmul + bias per batch tile.
# ---------------------------------------------------------------------------
def _overarch_kernel(x_ref, wf_ref, bf_ref, o_ref):
    o_ref[...] = (
        jnp.dot(x_ref[...], wf_ref[...], preferred_element_type=jnp.float32)
        + bf_ref[...]
    ).astype(o_ref.dtype)


def _round_up(x, m):
    return (x + m - 1) // m * m


# ---------------------------------------------------------------------------
# Wrapper: KeyedTensor.regroup / concat bookkeeping + folded weights + call
# ---------------------------------------------------------------------------
def overarch_forward(dense, sparse_values, embedding_names, weighted_features,
                     w0, b0, w1, b1, *, batch_tile=2048):
    """dense: (B, 8); sparse_values: dict name -> (B, dim) f32 array.

    Weights are stored transposed vs. nn.Linear: w0 (F, 16), w1 (16, 16),
    biases (1, 16), so math is x @ W + b.
    """
    # Piece order == concat order in the module: dense, embedding group,
    # weighted group (group-wise concat == concatenating the pieces in order;
    # a key present in both groups is — like KeyedTensor.regroup — included in
    # both).
    pieces = ([dense]
              + [sparse_values[n] for n in embedding_names]
              + [sparse_values[n] for n in weighted_features])
    # Single (B, F) activation; XLA fuses this concat with its producers, and
    # the kernel then needs only one DMA + one matmul per tile.
    x = jnp.concatenate(pieces, axis=1)
    B, F = x.shape
    H = w1.shape[1]          # 16

    # Fold linear0 + linear1 (exact: no nonlinearity between them).
    # Note: f32 rounding order differs from (x@W0)@W1 at the ~1e-5 level.
    wf = jnp.dot(w0, w1, preferred_element_type=jnp.float32)        # (F, 16)
    bf = jnp.dot(b0, w1, preferred_element_type=jnp.float32) + b1   # (1, 16)

    # Batch tile: always a multiple of 8 (f32 sublane constraint), as large as
    # the batch allows (VMEM is not the constraint on v5e/v6e/v7x here).
    TB = _round_up(min(batch_tile, B), 8)
    # For large batches make sure the grid has >= 2 steps so the "parallel"
    # axis can actually feed v7x's second TensorCore.
    if B >= 2048 and pl.cdiv(B, TB) < 2:
        TB = _round_up(pl.cdiv(B, 2), 8)
    grid = (pl.cdiv(B, TB),)

    cost = pl.CostEstimate(
        flops=2 * B * F * H,
        transcendentals=0,
        bytes_accessed=4 * (B * F + F * H + B * H + H),
    )

    out = pl.pallas_call(
        _overarch_kernel,
        out_shape=jax.ShapeDtypeStruct((B, H), jnp.float32),
        grid=grid,
        in_specs=[
            pl.BlockSpec((TB, F), lambda i: (i, 0)),   # activation tile
            pl.BlockSpec((F, H), lambda i: (0, 0)),    # folded weight (VMEM-resident)
            pl.BlockSpec((1, H), lambda i: (0, 0)),    # folded bias   (VMEM-resident)
        ],
        out_specs=pl.BlockSpec((TB, H), lambda i: (i, 0)),
        compiler_params=pltpu.CompilerParams(
            dimension_semantics=("parallel",)),        # shards steps over 2 TCs on v7x
        cost_estimate=cost,
    )(x, wf, bf)
    return out


# ---------------------------------------------------------------------------
# Deterministic parameter / input construction (synthetic, no checkpoint)
# ---------------------------------------------------------------------------
def _linear_params(key, fan_in, fan_out):
    # nn.Linear default init ranges (uniform +/- 1/sqrt(fan_in)), stored
    # transposed as (in, out) for x @ W.
    kw, kb = jax.random.split(key)
    bound = 1.0 / jnp.sqrt(float(fan_in))
    w = jax.random.uniform(kw, (fan_in, fan_out), jnp.float32, -bound, bound)
    b = jax.random.uniform(kb, (1, fan_out), jnp.float32, -bound, bound)
    return w, b


if __name__ == "__main__":
    # Synthetic EmbeddingBagConfig setup (mirrors TestOverArch.__init__):
    #   tables:           table_0 (dim=16, feature_0), table_1 (dim=16, feature_1)
    #   weighted_tables:  weighted_table_0 (dim=16, weighted_feature_0)
    tables = [("feature_0", 16), ("feature_1", 16)]
    weighted_tables = [("weighted_feature_0", 16)]
    embedding_names = [name for name, _ in tables]
    weighted_features = [name for name, _ in weighted_tables]

    dense_dim = 8
    in_features = (dense_dim
                   + sum(d for _, d in tables)
                   + sum(d for _, d in weighted_tables))   # 56

    B = 8
    key = jax.random.PRNGKey(0)
    k_dense, k_s0, k_s1, k_s2, k_l0, k_l1 = jax.random.split(key, 6)

    dense = jax.random.normal(k_dense, (B, dense_dim), jnp.float32)
    sparse_values = {
        "feature_0": jax.random.normal(k_s0, (B, 16), jnp.float32),
        "feature_1": jax.random.normal(k_s1, (B, 16), jnp.float32),
        "weighted_feature_0": jax.random.normal(k_s2, (B, 16), jnp.float32),
    }

    # TestDHNArch parameters: linear0 (in_features -> 16), linear1 (16 -> 16)
    w0, b0 = _linear_params(k_l0, in_features, 16)
    w1, b1 = _linear_params(k_l1, 16, 16)

    out = overarch_forward(dense, sparse_values, embedding_names,
                           weighted_features, w0, b0, w1, b1)
    out = jax.block_until_ready(out)

    # Reference check in plain JAX: the original (unfolded) two-layer math.
    x_ref = jnp.concatenate(
        [dense] + [sparse_values[n] for n in embedding_names]
                + [sparse_values[n] for n in weighted_features], axis=1)
    ref = (x_ref @ w0 + b0) @ w1 + b1
    assert out.shape == (B, 16)
    assert jnp.allclose(out, ref, atol=1e-4, rtol=1e-4)

    print("KERNEL_OK")
</pallas_src>

<mosaic_0001>
module attributes {stable_mosaic.version = 11 : i64} {
  func.func @_overarch_kernel(%arg0: i32, %arg1: memref<8x56xf32, #tpu.memory_space<vmem>>, %arg2: memref<56x16xf32, #tpu.memory_space<vmem>>, %arg3: memref<1x16xf32, #tpu.memory_space<vmem>>, %arg4: memref<8x16xf32, #tpu.memory_space<vmem>>) attributes {dimension_semantics = [#tpu.dimension_semantics<parallel>], iteration_bounds = array<i64: 1>, scalar_prefetch = 0 : i64, scratch_operands = 0 : i64, tpu.core_type = #tpu.core_type<tc>, window_params = [{transform_indices = @transform_0, window_bounds = array<i64: 8, 56>}, {pipeline_mode = #tpu.pipeline_mode<synchronous>, transform_indices = @transform_1, window_bounds = array<i64: 56, 16>}, {pipeline_mode = #tpu.pipeline_mode<synchronous>, transform_indices = @transform_2, window_bounds = array<i64: 1, 16>}, {transform_indices = @transform_3, window_bounds = array<i64: 8, 16>}]} {
    %c0 = arith.constant 0 : index
    %c0_0 = arith.constant 0 : index
    %0 = vector.load %arg1[%c0, %c0_0] : memref<8x56xf32, #tpu.memory_space<vmem>>, vector<8x56xf32>
    %c0_1 = arith.constant 0 : index
    %c0_2 = arith.constant 0 : index
    %1 = vector.load %arg2[%c0_1, %c0_2] : memref<56x16xf32, #tpu.memory_space<vmem>>, vector<56x16xf32>
    %cst = arith.constant dense<0.000000e+00> : vector<8x16xf32>
    %2 = tpu.matmul %0, %1, %cst {dimension_numbers = #tpu.dot_dimension_numbers<[1], [0], [0], [1], [0, 0, 1, 1], [], []>} : vector<8x56xf32>, vector<56x16xf32>, vector<8x16xf32> -> vector<8x16xf32>
    %c0_3 = arith.constant 0 : index
    %c0_4 = arith.constant 0 : index
    %3 = vector.load %arg3[%c0_3, %c0_4] : memref<1x16xf32, #tpu.memory_space<vmem>>, vector<1x16xf32>
    %4 = vector.broadcast %3 : vector<1x16xf32> to vector<8x16xf32>
    %5 = arith.addf %2, %4 : vector<8x16xf32>
    %c0_5 = arith.constant 0 : index
    %c0_6 = arith.constant 0 : index
    %6 = vector.load %arg4[%c0_5, %c0_6] : memref<8x16xf32, #tpu.memory_space<vmem>>, vector<8x16xf32>
    tpu.vector_store %arg4[%c0_5, %c0_6], %5 {strides = array<i32>} : memref<8x16xf32, #tpu.memory_space<vmem>>, vector<8x16xf32>,
    return
  }
  func.func @transform_0(%arg0: i32) -> (i32, i32) {
    %c0_i32 = arith.constant 0 : i32
    %c0_i32_0 = arith.constant 0 : i32
    return %arg0, %c0_i32 : i32, i32
  }
  func.func @transform_1(%arg0: i32) -> (i32, i32) {
    %c0_i32 = arith.constant 0 : i32
    %c0_i32_0 = arith.constant 0 : i32
    %c0_i32_1 = arith.constant 0 : i32
    return %c0_i32, %c0_i32_0 : i32, i32
  }
  func.func @transform_2(%arg0: i32) -> (i32, i32) {
    %c0_i32 = arith.constant 0 : i32
    %c0_i32_0 = arith.constant 0 : i32
    %c0_i32_1 = arith.constant 0 : i32
    return %c0_i32, %c0_i32_0 : i32, i32
  }
  func.func @transform_3(%arg0: i32) -> (i32, i32) {
    %c0_i32 = arith.constant 0 : i32
    %c0_i32_0 = arith.constant 0 : i32
    return %arg0, %c0_i32 : i32, i32
  }
}

</mosaic_0001>

<llo_original>
// kernel: tpu_custom_call.1
$region0: #{tpu_custom_call.1}
  #allocation0 [shape = 'u32[]', space=smem, size = 0x4, offset = 0x4, fixed_abs, tag = 'smem constant byte address 0x4 - core index']
  #allocation1 [shape = 'u32[144,128]{1,0:T(1,128)}', space=vmem, size = 0x12000, scoped, tag = 'internal scratch']
  %s0 = inlined_call_operand.vmem [shape: f32[8,56], index: 0, kind: input, shape index: {}]
  %s1 = inlined_call_operand.vmem [shape: f32[56,16], index: 1, kind: input, shape index: {}]
  %s2 = inlined_call_operand.vmem [shape: f32[1,16], index: 2, kind: input, shape index: {}]
  %s3 = inlined_call_operand.hbm [shape: f32[8,16], index: 3, kind: output, shape index: {}]
  %s4 = sld [smem:[#allocation0]]
  $region22: #{tpu_custom_call.1} parent=0
    _
  %s6 = ssub.s32 1, %s4
  %s7 = scalar_select 0, %s6, %s4
  $region1: #{tpu_custom_call.1} parent=0
    #allocation2 [shape = 'u8[4096]{0}', space=vmem, size = 0x1000, scoped, tag = 'output window, operand 0, single buffered']
    #allocation3 [shape = 's32[1]{0}', space=sflag, size = 0x4, scoped, tag = 'scoped memory for tpu_custom_call.1']
    %8 = vsyncpa [#allocation3], 0
    // Predicated region
    $region2: #{tpu_custom_call.1} parent=1 // pred_check
      _
    $region3: #{tpu_custom_call.1} parent=1 // pred_check_branch
      %10 = sbr.rel (0) target = $region5
    $region4: #{tpu_custom_call.1} parent=1 // pred_region
      _
    $region5: #{tpu_custom_call.1} parent=1 // pred_fallthru
      _
    // Predicated region
    $region6: #{tpu_custom_call.1} parent=1 // pred_check
      _
    $region7: #{tpu_custom_call.1} parent=1 // pred_check_branch
      %12 = sbr.rel (0) target = $region9
    $region8: #{tpu_custom_call.1} parent=1 // pred_region
      _
    $region9: #{tpu_custom_call.1} parent=1 // pred_fallthru
      _
    // Predicated region
    $region10: #{tpu_custom_call.1} parent=1 // pred_check
      _
    $region11: #{tpu_custom_call.1} parent=1 // pred_check_branch
      %14 = sbr.rel (0) target = $region13
    $region12: #{tpu_custom_call.1} parent=1 // pred_region
      _
    $region13: #{tpu_custom_call.1} parent=1 // pred_fallthru
      _
    %v15 = vld [vmem:[%s0] sm:$0xff]
    %v16 = vld [vmem:[%s1] sm:$0xff]
    %v17 = vld [vmem:[%s1 + $0x8] sm:$0xff]
    %v18 = vld [vmem:[%s1 + $0x10] sm:$0xff]
    %v19 = vld [vmem:[%s1 + $0x18] sm:$0xff]
    %v20 = vld [vmem:[%s1 + $0x20] sm:$0xff]
    %v21 = vld [vmem:[%s1 + $0x28] sm:$0xff]
    %v22 = vld [vmem:[%s1 + $0x30] sm:$0xff]
    %v23 = vld [vmem:[%s2] sm:$0x1]
    %v25 = vlaneseq
    %v26 = vshrl.u32 %v25, 7
    %v27 = vsub.s32 0, %v26
    %v28 = vrot.slane %v23, %v27
    %vm30 = vcmask 457728
    %v32 = vsel %vm30, %v15, 0
    %34 = vmatprep.subr.mxu0 0.0
    %35 = vmatpush1.msra.mxu0 %v16
    %36 = vmatprep.subr.mxu0 0.0
    %37 = vmatpush1.msra.mxu0 %v17
    %38 = vmatprep.subr.mxu0 0.0
    %39 = vmatpush1.msra.mxu0 %v18
    %40 = vmatprep.subr.mxu0 0.0
    %41 = vmatpush1.msra.mxu0 %v19
    %42 = vmatprep.subr.mxu0 0.0
    %43 = vmatpush1.msra.mxu0 %v20
    %44 = vmatprep.subr.mxu0 0.0
    %45 = vmatpush1.msra.mxu0 %v21
    %46 = vmatprep.subr.mxu0 0.0
    %47 = vmatpush1.msra.mxu0 %v22
    %48 = vmatprep.subr.mxu0 0.0
    %49 = vmatpush1.msra.mxu0 0.0
    %50 = vmatprep.subr.mxu0 0.0
    %51 = vmatpush1.msra.mxu0 0.0
    %52 = vmatprep.subr.mxu0 0.0
    %53 = vmatpush1.msra.mxu0 0.0
    %54 = vmatprep.subr.mxu0 0.0
    %55 = vmatpush1.msra.mxu0 0.0
    %56 = vmatprep.subr.mxu0 0.0
    %57 = vmatpush1.msra.mxu0 0.0
    %58 = vmatprep.subr.mxu0 0.0
    %59 = vmatpush1.msra.mxu0 0.0
    %60 = vmatprep.subr.mxu0 0.0
    %61 = vmatpush1.msra.mxu0 0.0
    %62 = vmatprep.subr.mxu0 0.0
    %63 = vmatpush1.msra.mxu0 0.0
    %64 = vmatprep.subr.mxu0 0.0
    %65 = vmatpush1.msra.mxu0 0.0
    %66 = vmatprep.subr.mxu0 0.0
    %67 = vmatpush1.msra.mxu0 0.0
    %68 = vmatprep.subr.mxu0 0.0
    %69 = vmatpush1.msra.mxu0 0.0
    %70 = vmatprep.subr.mxu0 0.0
    %71 = vmatpush1.msra.mxu0 0.0
    %72 = vmatprep.subr.mxu0 0.0
    %73 = vmatpush1.msra.mxu0 0.0
    %74 = vmatprep.subr.mxu0 0.0
    %75 = vmatpush1.msra.mxu0 0.0
    %76 = vmatprep.subr.mxu0 0.0
    %77 = vmatpush1.msra.mxu0 0.0
    %78 = vmatprep.subr.mxu0 0.0
    %79 = vmatpush1.msra.mxu0 0.0
    %80 = vmatprep.subr.mxu0 0.0
    %81 = vmatpush1.msra.mxu0 0.0
    %82 = vmatprep.subr.mxu0 0.0
    %83 = vmatpush1.msra.mxu0 0.0
    %84 = vmatprep.subr.mxu0 0.0
    %85 = vmatpush1.msra.mxu0 0.0
    %86 = vmatprep.subr.mxu0 0.0
    %87 = vmatpush1.msra.mxu0 0.0
    %88 = vmatprep.subr.mxu0 0.0
    %89 = vmatpush1.msra.mxu0 0.0
    %90 = vmatprep.subr.mxu0 0.0
    %91 = vmatpush1.msra.mxu0 0.0
    %92 = vmatprep.subr.mxu0 0.0
    %93 = vmatpush1.msra.mxu0 0.0
    %94 = vmatprep.subr.mxu0 0.0
    %95 = vmatpush1.msra.mxu0 0.0
    %96 = vmatprep.subr.mxu0 0.0
    %97 = vmatpush1.msra.mxu0 0.0
    %98 = vmatprep.mubr.f32.mxu0 0.0
    %99 = vmatmul.mubr.f32.gmra.mrb[0].mxu0 %v32
    %v100 = vpop.f32.mrb[0].mxu0
    %v101 = vadd.f32 %v28, %v100
    %v102 = vpop.f32.mrb[0].mxu0
    %103 = vdwg.mxu0
    %vm104 = vcmask 130048
    %105 = vst.msk [vmem:[#allocation2] sm:$0xff] %vm104, %v101
    // Predicated region
    $region14: #{tpu_custom_call.1} parent=1 // pred_check
      _
    $region15: #{tpu_custom_call.1} parent=1 // pred_check_branch
      %107 = sbr.rel (0) target = $region17
    $region16: #{tpu_custom_call.1} parent=1 // pred_region
      %s109 = ssub.s32 128, 128
      %110 = vsyncadd [#allocation3], %s109
      %s112 = sshll.u32 [#allocation2], 4
      %s113 = int_to_ptr.vmem [resolvable:$true] %s112
      %115 = dma.vmem_to_hbm [thread:$0]  %s113, 128, %s3, [#allocation3]
    $region17: #{tpu_custom_call.1} parent=1 // pred_fallthru
      _
    // Predicated region
    $region18: #{tpu_custom_call.1} parent=1 // pred_check
      _
    $region19: #{tpu_custom_call.1} parent=1 // pred_check_branch
      %117 = sbr.rel (0) target = $region21
    $region20: #{tpu_custom_call.1} parent=1 // pred_region
      %118 = dma.done [#allocation3], 128
    $region21: #{tpu_custom_call.1} parent=1 // pred_fallthru
      _
    %119 = vsyncpa [#allocation3], 1

</llo_original>
